<compile_context>
chip_gen: v5e
topology: v5e:2x2
jax: 0.10.0
libtpu: 0.0.40
codegen_flags: <defaults>
</compile_context>

<pallas_src>
import functools

import jax
import jax.numpy as jnp
from jax.experimental import pallas as pl
from jax.experimental.pallas import tpu as pltpu


def _l2_joint_loss_kernel(hm_ref, tgt_ref, w_ref, out_ref, *, n_valid_rows, use_mxu):
    # hm_ref : (TR, N)      heatmap rows, one row per (batch, joint), source dtype
    # tgt_ref: (TR, 2)      [target_x, target_y]
    # w_ref  : MXU path: (N, 128) f32, columns [1, x/W, y/H, 0, ...]
    #          VPU path: (2, N)  f32, rows    [x/W, y/H]
    # out_ref: (1, 8, 128)  broadcast partial loss for this block
    tr = hm_ref.shape[0]
    row0 = pl.program_id(0) * tr
    row_ids = row0 + jax.lax.broadcasted_iota(jnp.int32, (tr, 1), 0)
    valid = row_ids < n_valid_rows                              # (TR, 1) bool

    # Sanitize rows of a partially out-of-bounds last block BEFORE exp so that
    # unspecified data (possibly inf/NaN) can never poison the block partial.
    hm = jnp.where(valid, hm_ref[...], 0)                       # source dtype
    m = jnp.max(hm, axis=-1, keepdims=True)                     # exact in bf16/f32
    e = jnp.exp(hm.astype(jnp.float32) - m.astype(jnp.float32))  # (TR, N) f32

    if use_mxu:
        # One MXU pass yields [sum(e), sum(e*wx), sum(e*wy)] per row.
        red = jnp.dot(e, w_ref[...],
                      preferred_element_type=jnp.float32,
                      precision=jax.lax.Precision.HIGHEST)       # (TR, 128)
        s, sx, sy = red[:, 0:1], red[:, 1:2], red[:, 2:3]
    else:
        wx = w_ref[0:1, :]
        wy = w_ref[1:2, :]
        s = jnp.sum(e, axis=-1, keepdims=True)
        sx = jnp.sum(e * wx, axis=-1, keepdims=True)
        sy = jnp.sum(e * wy, axis=-1, keepdims=True)

    inv = pl.reciprocal(s, approx=True)                         # EUP slot
    inv = inv * (2.0 - s * inv)                                 # Newton step -> ~f32 exact
    x = sx * inv - 0.5
    y = sy * inv - 0.5

    dx = x - tgt_ref[:, 0:1]
    dy = y - tgt_ref[:, 1:2]
    contrib = jnp.where(valid, dx * dx + dy * dy, 0.0)          # drop padded rows
    loss = jnp.sum(contrib)                                     # scalar partial (L2 sum)
    out_ref[...] = jnp.broadcast_to(loss, out_ref.shape).astype(out_ref.dtype)


def _tpu_generation():
    try:
        kind = jax.devices()[0].device_kind.lower()
    except Exception:
        return None
    for g in ("v7", "v6", "v5", "v4", "v3", "v2"):
        if g in kind:
            return g
    return None


def _row_align(dtype):
    # Native sublane tiling: 8 rows for 4-byte dtypes, 16 for 2-byte, 32 for 1-byte.
    return max(8, 32 // jnp.dtype(dtype).itemsize)


def _choose_tile_rows(n_rows, n_cols, *, max_tile_bytes, row_align,
                      min_blocks=4, max_rows=1024):
    """Rows per grid step: multiple of row_align, f32 tile <= max_tile_bytes, and
    small enough that the grid has >= min_blocks blocks (v7x 2-TC sharding and
    DMA/compute overlap), floored at one aligned row group."""
    a = row_align
    rows_by_vmem = max(a, (max_tile_bytes // (n_cols * 4)) // a * a)
    rows_pad = -(-n_rows // a) * a
    rows_for_blocks = max(a, (-(-n_rows // min_blocks) + a - 1) // a * a)
    return int(min(rows_by_vmem, max_rows, rows_pad, rows_for_blocks))


def l2_joint_location_loss(output, target):
    """output: (B, J, W, H) heatmaps; target: (B, 2*J) interleaved [x0,y0,x1,y1,...].

    Matches the PyTorch L2JointLocationLoss forward (sum of squared errors,
    size_average=False).  As in the PyTorch reference (which reshapes the flat
    softmax to (..., 1, H, W)), flat index n decomposes as x = n % W, y = n // W.
    """
    B, J, W, H = output.shape
    N = W * H
    R = B * J

    gen = _tpu_generation()
    is_old_gen = gen in ("v2", "v3", "v4", "v5")
    # MXU offload only where it wins (v6e/v7x) and the resident (N,128) weight
    # stays small; v5-class keeps the VPU reduction path.
    use_mxu = (not is_old_gen) and (N * 128 * 4 <= (8 << 20))
    max_tile_bytes = (1 << 20) if is_old_gen else (4 << 20)

    # Big-N guard: even the minimum aligned-row f32 tile must fit the budget.
    if 8 * N * 4 > (8 << 20):
        # TODO(synk): split the reduction along N (online-softmax accumulators
        # over an "arbitrary" inner grid axis) for very large heatmaps.
        raise NotImplementedError("heatmap row too large for single-tile reduction")

    align = _row_align(output.dtype)
    tr = _choose_tile_rows(R, N, max_tile_bytes=max_tile_bytes, row_align=align)
    n_blocks = (R + tr - 1) // tr

    # One row per (batch, joint).  Keep the source dtype in HBM (bf16 stays bf16).
    hm2d = output.reshape(R, N)
    tgt2d = target.reshape(R, 2).astype(jnp.float32)

    # Coordinate weights with 1/W, 1/H pre-folded; flat n -> x = n % W, y = n // W.
    idx = jnp.arange(N)
    wx = (idx % W).astype(jnp.float32) / float(W)
    wy = (idx // W).astype(jnp.float32) / float(H)
    if use_mxu:
        w = jnp.zeros((N, 128), jnp.float32)
        w = w.at[:, 0].set(1.0).at[:, 1].set(wx).at[:, 2].set(wy)
        w_spec = pl.BlockSpec((N, 128), lambda i: (0, 0))
    else:
        w = jnp.stack([wx, wy], axis=0)                         # (2, N)
        w_spec = pl.BlockSpec((2, N), lambda i: (0, 0))

    # VMEM budget: double-buffered source tiles + in-kernel f32 intermediates
    # (f32 copy, e, reduction temps) + resident weights (x2 buffers) + headroom.
    itemsize = jnp.dtype(output.dtype).itemsize
    est = 2 * tr * N * itemsize + 5 * tr * N * 4 + 2 * int(w.size) * 4 + (2 << 20)
    vmem_limit = int(min(48 << 20, max(est, 16 << 20)))

    partial = pl.pallas_call(
        functools.partial(_l2_joint_loss_kernel, n_valid_rows=R, use_mxu=use_mxu),
        out_shape=jax.ShapeDtypeStruct((n_blocks, 8, 128), jnp.float32),
        grid_spec=pltpu.PrefetchScalarGridSpec(
            num_scalar_prefetch=0,
            grid=(n_blocks,),
            in_specs=[
                pl.BlockSpec((tr, N), lambda i: (i, 0)),        # heatmap rows (big tile)
                pl.BlockSpec((tr, 2), lambda i: (i, 0)),        # [tx, ty]
                w_spec,                                         # resident coord weights
            ],
            out_specs=pl.BlockSpec((1, 8, 128), lambda i: (i, 0, 0)),
        ),
        compiler_params=pltpu.CompilerParams(
            dimension_semantics=("parallel",),                  # independent per-block partials
            vmem_limit_bytes=vmem_limit),
    )(hm2d, tgt2d, w)

    return jnp.sum(partial[:, 0, 0])


def _reference_loss(output, target):
    """Pure-JAX mirror of the PyTorch forward (z_dim = 1), valid for W != H."""
    B, J, W, H = output.shape
    N = W * H
    p = jax.nn.softmax(output.reshape(B, J, N).astype(jnp.float32), axis=-1)
    # PyTorch reshapes the flat softmax to (B, J, 1, H, W): last axis (extent W)
    # is x, middle axis (extent H) is y.
    p5 = p.reshape(B, J, 1, H, W)
    accu_x = p5.sum(axis=2).sum(axis=2)                         # (B, J, W)
    accu_y = p5.sum(axis=2).sum(axis=3)                         # (B, J, H)
    x = jnp.sum(accu_x * jnp.arange(W, dtype=jnp.float32), axis=-1) / W - 0.5
    y = jnp.sum(accu_y * jnp.arange(H, dtype=jnp.float32), axis=-1) / H - 0.5
    pred = jnp.stack([x, y], axis=-1).reshape(B, 2 * J)
    d = pred - target.reshape(B, 2 * J).astype(jnp.float32)
    return jnp.sum(d * d)


if __name__ == "__main__":
    key = jax.random.PRNGKey(0)
    k1, k2, k3, k4 = jax.random.split(key, 4)

    # Case 1: square heatmap, f32 (module-typical small shapes).
    B, J, W, H = 2, 4, 16, 16
    output = jax.random.normal(k1, (B, J, W, H), dtype=jnp.float32)
    target = 0.5 * jax.random.normal(k2, (B, 2 * J), dtype=jnp.float32)  # (x0,y0,x1,y1,...)
    loss = jax.block_until_ready(l2_joint_location_loss(output, target))
    ref = jax.block_until_ready(_reference_loss(output, target))
    assert abs(float(loss) - float(ref)) < 1e-3 * (1.0 + abs(float(ref))), (
        float(loss), float(ref))

    # Case 2: non-square heatmap (W != H), bf16 source, ragged row count
    # (R = 15 -> partially out-of-bounds block exercises the in-kernel mask).
    B2, J2, W2, H2 = 3, 5, 16, 24
    output2 = jax.random.normal(k3, (B2, J2, W2, H2), dtype=jnp.float32).astype(jnp.bfloat16)
    target2 = 0.5 * jax.random.normal(k4, (B2, 2 * J2), dtype=jnp.float32)
    loss2 = jax.block_until_ready(l2_joint_location_loss(output2, target2))
    ref2 = jax.block_until_ready(_reference_loss(output2.astype(jnp.float32), target2))
    assert abs(float(loss2) - float(ref2)) < 2e-3 * (1.0 + abs(float(ref2))), (
        float(loss2), float(ref2))

    print("KERNEL_OK")
</pallas_src>

<mosaic_0001>
module attributes {stable_mosaic.version = 11 : i64} {
  func.func @_l2_joint_loss_kernel(%arg0: i32, %arg1: memref<8x256xf32, #tpu.memory_space<vmem>>, %arg2: memref<8x2xf32, #tpu.memory_space<vmem>>, %arg3: memref<256x128xf32, #tpu.memory_space<vmem>>, %arg4: memref<1x8x128xf32, #tpu.memory_space<vmem>>) attributes {dimension_semantics = [#tpu.dimension_semantics<parallel>], iteration_bounds = array<i64: 1>, scalar_prefetch = 0 : i64, scratch_operands = 0 : i64, tpu.core_type = #tpu.core_type<tc>, window_params = [{transform_indices = @transform_0, window_bounds = array<i64: 8, 256>}, {transform_indices = @transform_1, window_bounds = array<i64: 8, 2>}, {pipeline_mode = #tpu.pipeline_mode<synchronous>, transform_indices = @transform_2, window_bounds = array<i64: 256, 128>}, {transform_indices = @transform_3, window_bounds = array<i64: 1, 8, 128>}]} {
    %c8_i32 = arith.constant 8 : i32
    %0 = arith.muli %arg0, %c8_i32 : i32
    %1 = tpu.iota {dimensions = array<i32: 0>} : vector<8x1xi32>
    %2 = vector.broadcast %0 : i32 to vector<8x1xi32>
    %3 = arith.addi %2, %1 : vector<8x1xi32>
    %c8_i32_0 = arith.constant 8 : i32
    %4 = vector.broadcast %c8_i32_0 : i32 to vector<8x1xi32>
    %5 = arith.cmpi slt, %3, %4 : vector<8x1xi32>
    %c0 = arith.constant 0 : index
    %c0_1 = arith.constant 0 : index
    %6 = vector.load %arg1[%c0, %c0_1] : memref<8x256xf32, #tpu.memory_space<vmem>>, vector<8x256xf32>
    %c0_i32 = arith.constant 0 : i32
    %7 = arith.sitofp %c0_i32 : i32 to f32
    %8 = vector.shape_cast %5 : vector<8x1xi1> to vector<8x1xi1>
    %9 = vector.broadcast %8 : vector<8x1xi1> to vector<8x256xi1>
    %10 = vector.broadcast %7 : f32 to vector<8x256xf32>
    %11 = arith.select %9, %6, %10 : vector<8x256xi1>, vector<8x256xf32>
    %cst = arith.constant dense<0xFF800000> : vector<8xf32>
    %12 = vector.multi_reduction <maximumf>, %11, %cst [1] : vector<8x256xf32> to vector<8xf32>
    %13 = vector.shape_cast %12 : vector<8xf32> to vector<8x1xf32>
    %14 = vector.broadcast %13 : vector<8x1xf32> to vector<8x256xf32>
    %15 = arith.subf %11, %14 : vector<8x256xf32>
    %16 = math.exp %15 : vector<8x256xf32>
    %c0_2 = arith.constant 0 : index
    %c0_3 = arith.constant 0 : index
    %17 = vector.load %arg3[%c0_2, %c0_3] : memref<256x128xf32, #tpu.memory_space<vmem>>, vector<256x128xf32>
    %cst_4 = arith.constant dense<0.000000e+00> : vector<8x128xf32>
    %18 = tpu.matmul %16, %17, %cst_4 {dimension_numbers = #tpu.dot_dimension_numbers<[1], [0], [0], [1], [0, 0, 1, 1], [], []>, precision = #tpu.contract_precision<fp32>} : vector<8x256xf32>, vector<256x128xf32>, vector<8x128xf32> -> vector<8x128xf32>
    %19 = vector.extract_strided_slice %18 {offsets = [0, 0], sizes = [8, 1], strides = [1, 1]} : vector<8x128xf32> to vector<8x1xf32>
    %20 = vector.extract_strided_slice %18 {offsets = [0, 1], sizes = [8, 1], strides = [1, 1]} : vector<8x128xf32> to vector<8x1xf32>
    %21 = vector.extract_strided_slice %18 {offsets = [0, 2], sizes = [8, 1], strides = [1, 1]} : vector<8x128xf32> to vector<8x1xf32>
    %22 = tpu.reciprocal %19 {approx = true} : vector<8x1xf32> -> vector<8x1xf32>
    %23 = arith.mulf %19, %22 : vector<8x1xf32>
    %cst_5 = arith.constant 2.000000e+00 : f32
    %24 = vector.broadcast %cst_5 : f32 to vector<8x1xf32>
    %25 = arith.subf %24, %23 : vector<8x1xf32>
    %26 = arith.mulf %22, %25 : vector<8x1xf32>
    %27 = arith.mulf %20, %26 : vector<8x1xf32>
    %cst_6 = arith.constant 5.000000e-01 : f32
    %28 = vector.broadcast %cst_6 : f32 to vector<8x1xf32>
    %29 = arith.subf %27, %28 : vector<8x1xf32>
    %30 = arith.mulf %21, %26 : vector<8x1xf32>
    %cst_7 = arith.constant 5.000000e-01 : f32
    %31 = vector.broadcast %cst_7 : f32 to vector<8x1xf32>
    %32 = arith.subf %30, %31 : vector<8x1xf32>
    %c0_8 = arith.constant 0 : index
    %c0_9 = arith.constant 0 : index
    %33 = vector.load %arg2[%c0_8, %c0_9] : memref<8x2xf32, #tpu.memory_space<vmem>>, vector<8x1xf32>
    %34 = arith.subf %29, %33 : vector<8x1xf32>
    %c0_10 = arith.constant 0 : index
    %c1 = arith.constant 1 : index
    %35 = vector.load %arg2[%c0_10, %c1] : memref<8x2xf32, #tpu.memory_space<vmem>>, vector<8x1xf32>
    %36 = arith.subf %32, %35 : vector<8x1xf32>
    %37 = arith.mulf %34, %34 : vector<8x1xf32>
    %38 = arith.mulf %36, %36 : vector<8x1xf32>
    %39 = arith.addf %37, %38 : vector<8x1xf32>
    %cst_11 = arith.constant 0.000000e+00 : f32
    %40 = vector.broadcast %cst_11 : f32 to vector<8x1xf32>
    %41 = arith.select %5, %39, %40 : vector<8x1xi1>, vector<8x1xf32>
    %42 = vector.shape_cast %41 : vector<8x1xf32> to vector<1x8x1xf32>
    %cst_12 = arith.constant dense<0.000000e+00> : vector<1xf32>
    %43 = vector.multi_reduction <add>, %42, %cst_12 [1, 2] : vector<1x8x1xf32> to vector<1xf32>
    %44 = vector.shape_cast %43 : vector<1xf32> to vector<1x1x1xf32>
    %45 = vector.extract %44[0, 0, 0] : f32 from vector<1x1x1xf32>
    %46 = vector.broadcast %45 : f32 to vector<1x8x128xf32>
    %c0_13 = arith.constant 0 : index
    %c0_14 = arith.constant 0 : index
    %c0_15 = arith.constant 0 : index
    %47 = vector.load %arg4[%c0_13, %c0_14, %c0_15] : memref<1x8x128xf32, #tpu.memory_space<vmem>>, vector<1x8x128xf32>
    tpu.vector_store %arg4[%c0_13, %c0_14, %c0_15], %46 {strides = array<i32>} : memref<1x8x128xf32, #tpu.memory_space<vmem>>, vector<1x8x128xf32>,
    return
  }
  func.func @transform_0(%arg0: i32) -> (i32, i32) {
    %c0_i32 = arith.constant 0 : i32
    %c0_i32_0 = arith.constant 0 : i32
    return %arg0, %c0_i32 : i32, i32
  }
  func.func @transform_1(%arg0: i32) -> (i32, i32) {
    %c0_i32 = arith.constant 0 : i32
    %c0_i32_0 = arith.constant 0 : i32
    return %arg0, %c0_i32 : i32, i32
  }
  func.func @transform_2(%arg0: i32) -> (i32, i32) {
    %c0_i32 = arith.constant 0 : i32
    %c0_i32_0 = arith.constant 0 : i32
    %c0_i32_1 = arith.constant 0 : i32
    return %c0_i32, %c0_i32_0 : i32, i32
  }
  func.func @transform_3(%arg0: i32) -> (i32, i32, i32) {
    %c0_i32 = arith.constant 0 : i32
    %c0_i32_0 = arith.constant 0 : i32
    %c0_i32_1 = arith.constant 0 : i32
    return %arg0, %c0_i32, %c0_i32_0 : i32, i32, i32
  }
}

</mosaic_0001>

<llo_original>
// kernel: tpu_custom_call.1
$region0: #{tpu_custom_call.1}
  #allocation0 [shape = 'u32[]', space=smem, size = 0x4, offset = 0x4, fixed_abs, tag = 'smem constant byte address 0x4 - core index']
  #allocation1 [shape = 'u32[72,128]{1,0:T(1,128)}', space=vmem, size = 0x9000, scoped, tag = 'internal scratch']
  %s0 = inlined_call_operand.hbm [shape: f32[8,256], index: 0, kind: input, shape index: {}]
  %s1 = inlined_call_operand.vmem [shape: f32[8,2], index: 1, kind: input, shape index: {}]
  %s2 = inlined_call_operand.hbm [shape: f32[256,128], index: 2, kind: input, shape index: {}]
  %s3 = inlined_call_operand.hbm [shape: f32[1,8,128], index: 3, kind: output, shape index: {}]
  %s4 = sld [smem:[#allocation0]]
  $region30: #{tpu_custom_call.1} parent=0
    _
  %s6 = ssub.s32 1, %s4
  %s7 = scalar_select 0, %s6, %s4
  $region1: #{tpu_custom_call.1} parent=0
    #allocation2 [shape = 'u8[8192]{0}', space=vmem, size = 0x2000, scoped, tag = 'input window, operand 0, single buffered']
    #allocation3 [shape = 's32[1]{0}', space=sflag, size = 0x4, scoped, tag = 'scoped memory for tpu_custom_call.1']
    #allocation4 [shape = 's32[1]{0}', space=sflag, size = 0x4, scoped, tag = 'scoped memory for tpu_custom_call.1']
    #allocation5 [shape = 'u8[131072]{0}', space=vmem, size = 0x20000, scoped, tag = 'input window, operand 2, single buffered']
    #allocation6 [shape = 's32[1]{0}', space=sflag, size = 0x4, scoped, tag = 'scoped memory for tpu_custom_call.1']
    #allocation7 [shape = 'u8[4096]{0}', space=vmem, size = 0x1000, scoped, tag = 'output window, operand 0, single buffered']
    %8 = vsyncpa [#allocation3], 0
    %9 = vsyncpa [#allocation6], 0
    %10 = vsyncpa [#allocation4], 0
    // Predicated region
    $region2: #{tpu_custom_call.1} parent=1 // pred_check
      _
    $region3: #{tpu_custom_call.1} parent=1 // pred_check_branch
      %12 = sbr.rel (0) target = $region5
    $region4: #{tpu_custom_call.1} parent=1 // pred_region
      %14 = vsyncadd [#allocation3], 0
      %s16 = sshll.u32 %s0, 4
      %s17 = int_to_ptr.hbm [resolvable:$true] %s16
      %s18 = sshll.u32 [#allocation2], 4
      %s19 = int_to_ptr.vmem [resolvable:$true] %s18
      %21 = dma.hbm_to_vmem [thread:$0]  %s17, 256, %s19, [#allocation3]
    $region5: #{tpu_custom_call.1} parent=1 // pred_fallthru
      _
    // Predicated region
    $region6: #{tpu_custom_call.1} parent=1 // pred_check
      _
    $region7: #{tpu_custom_call.1} parent=1 // pred_check_branch
      %23 = sbr.rel (0) target = $region9
    $region8: #{tpu_custom_call.1} parent=1 // pred_region
      _
    $region9: #{tpu_custom_call.1} parent=1 // pred_fallthru
      _
    // Predicated region
    $region10: #{tpu_custom_call.1} parent=1 // pred_check
      _
    $region11: #{tpu_custom_call.1} parent=1 // pred_check_branch
      %25 = sbr.rel (0) target = $region13
    $region12: #{tpu_custom_call.1} parent=1 // pred_region
      %27 = vsyncadd [#allocation6], 0
      %s28 = sshll.u32 %s2, 4
      %s29 = int_to_ptr.hbm [resolvable:$true] %s28
      %s30 = sshll.u32 [#allocation5], 4
      %s31 = int_to_ptr.vmem [resolvable:$true] %s30
      %36 = dma.hbm_to_vmem [thread:$0]  %s29, 4096, %s31, [#allocation6], 128, 128, 8
    $region13: #{tpu_custom_call.1} parent=1 // pred_fallthru
      _
    // Predicated region
    $region14: #{tpu_custom_call.1} parent=1 // pred_check
      _
    $region15: #{tpu_custom_call.1} parent=1 // pred_check_branch
      %38 = sbr.rel (0) target = $region17
    $region16: #{tpu_custom_call.1} parent=1 // pred_region
      %40 = dma.done [#allocation3], 256
    $region17: #{tpu_custom_call.1} parent=1 // pred_fallthru
      _
    // Predicated region
    $region18: #{tpu_custom_call.1} parent=1 // pred_check
      _
    $region19: #{tpu_custom_call.1} parent=1 // pred_check_branch
      %42 = sbr.rel (0) target = $region21
    $region20: #{tpu_custom_call.1} parent=1 // pred_region
      %44 = dma.done [#allocation6], 4096
    $region21: #{tpu_custom_call.1} parent=1 // pred_fallthru
      _
    %s45 = smul.u32 0, 8
    %v46 = vlaneseq
    %v47 = vshrl.u32 %v46, 7
    %v48 = vstv %s45
    %v49 = vadd.s32 %v48, %v47
    %vm50 = vcmp.lt.s32.totalorder %v49, 8
    %v51 = vld [vmem:[#allocation2] sm:$0xff]
    %v52 = vld [vmem:[#allocation2 + $0x8] sm:$0xff]
    %v53 = vsel %vm50, 1, 0
    %vm54 = vcmp.eq.s32.totalorder %v53, 1
    %v55 = vsel %vm54, %v51, 0.0
    %v56 = vsel %vm54, %v52, 0.0
    %v57 = vmax.f32 %v55, %v56
    %58 = vmax.xlane.f32.xlu0 %v57
    %v59 = vpop.xlane.xlu0 %58
    %v60 = vsub.f32 %v55, %v59
    %v61 = vsub.f32 %v56, %v59
    %v62 = vmul.f32 %v60, 1.442695
    %v63 = vpow.pop %v62
    %v64 = vmul.f32 %v61, 1.442695
    %v65 = vpow.pop %v64
    %v66 = vld [vmem:[#allocation5] sm:$0xff]
    %v67 = vld [vmem:[#allocation5 + $0x8] sm:$0xff]
    %v68 = vld [vmem:[#allocation5 + $0x10] sm:$0xff]
    %v69 = vld [vmem:[#allocation5 + $0x18] sm:$0xff]
    %v70 = vld [vmem:[#allocation5 + $0x20] sm:$0xff]
    %v71 = vld [vmem:[#allocation5 + $0x28] sm:$0xff]
    %v72 = vld [vmem:[#allocation5 + $0x30] sm:$0xff]
    %v73 = vld [vmem:[#allocation5 + $0x38] sm:$0xff]
    %v74 = vld [vmem:[#allocation5 + $0x40] sm:$0xff]
    %v75 = vld [vmem:[#allocation5 + $0x48] sm:$0xff]
    %v76 = vld [vmem:[#allocation5 + $0x50] sm:$0xff]
    %v77 = vld [vmem:[#allocation5 + $0x58] sm:$0xff]
    %v78 = vld [vmem:[#allocation5 + $0x60] sm:$0xff]
    %v79 = vld [vmem:[#allocation5 + $0x68] sm:$0xff]
    %v80 = vld [vmem:[#allocation5 + $0x70] sm:$0xff]
    %v81 = vld [vmem:[#allocation5 + $0x78] sm:$0xff]
    %v82 = vld [vmem:[#allocation5 + $0x80] sm:$0xff]
    %v83 = vld [vmem:[#allocation5 + $0x88] sm:$0xff]
    %v84 = vld [vmem:[#allocation5 + $0x90] sm:$0xff]
    %v85 = vld [vmem:[#allocation5 + $0x98] sm:$0xff]
    %v86 = vld [vmem:[#allocation5 + $0xa0] sm:$0xff]
    %v87 = vld [vmem:[#allocation5 + $0xa8] sm:$0xff]
    %v88 = vld [vmem:[#allocation5 + $0xb0] sm:$0xff]
    %v89 = vld [vmem:[#allocation5 + $0xb8] sm:$0xff]
    %v90 = vld [vmem:[#allocation5 + $0xc0] sm:$0xff]
    %v91 = vld [vmem:[#allocation5 + $0xc8] sm:$0xff]
    %v92 = vld [vmem:[#allocation5 + $0xd0] sm:$0xff]
    %v93 = vld [vmem:[#allocation5 + $0xd8] sm:$0xff]
    %v94 = vld [vmem:[#allocation5 + $0xe0] sm:$0xff]
    %v95 = vld [vmem:[#allocation5 + $0xe8] sm:$0xff]
    %v96 = vld [vmem:[#allocation5 + $0xf0] sm:$0xff]
    %v97 = vld [vmem:[#allocation5 + $0xf8] sm:$0xff]
    %v98 = vand.u32 %v81, 4294901760
    %99 = vmatpush.msra.mxu0 %v98
    %v100 = vand.u32 %v80, 4294901760
    %101 = vmatpush.msra.mxu0 %v100
    %v102 = vand.u32 %v79, 4294901760
    %103 = vmatpush.msra.mxu0 %v102
    %v104 = vand.u32 %v78, 4294901760
    %105 = vmatpush.msra.mxu0 %v104
    %v106 = vand.u32 %v77, 4294901760
    %107 = vmatpush.msra.mxu0 %v106
    %v108 = vand.u32 %v76, 4294901760
    %109 = vmatpush.msra.mxu0 %v108
    %v110 = vand.u32 %v75, 4294901760
    %111 = vmatpush.msra.mxu0 %v110
    %v112 = vand.u32 %v74, 4294901760
    %113 = vmatpush.msra.mxu0 %v112
    %v114 = vand.u32 %v73, 4294901760
    %115 = vmatpush.msra.mxu0 %v114
    %v116 = vand.u32 %v72, 4294901760
    %117 = vmatpush.msra.mxu0 %v116
    %v118 = vand.u32 %v71, 4294901760
    %119 = vmatpush.msra.mxu0 %v118
    %v120 = vand.u32 %v70, 4294901760
    %121 = vmatpush.msra.mxu0 %v120
    %v122 = vand.u32 %v69, 4294901760
    %123 = vmatpush.msra.mxu0 %v122
    %v124 = vand.u32 %v68, 4294901760
    %125 = vmatpush.msra.mxu0 %v124
    %v126 = vand.u32 %v67, 4294901760
    %127 = vmatpush.msra.mxu0 %v126
    %v128 = vand.u32 %v66, 4294901760
    %129 = vmatpush.msra.mxu0 %v128
    %v130 = vand.u32 %v63, 4294901760
    %v131 = vsub.f32 %v63, %v130
    %v132 = vand.u32 %v131, 4294901760
    %v133 = vsub.f32 %v131, %v132
    %v134 = vand.u32 %v133, 4294901760
    %135 = vmatmul.f32.gmra.mxu0 %v134
    %v136 = vpop.f32.mrf.mxu0
    %v137 = vadd.f32 0.0, %v136
    %138 = vdwg.mxu0
    %v139 = vand.u32 %v81, 4294901760
    %v140 = vsub.f32 %v81, %v139
    %v141 = vand.u32 %v140, 4294901760
    %v142 = vsub.f32 %v140, %v141
    %v143 = vand.u32 %v142, 4294901760
    %144 = vmatpush.msra.mxu0 %v143
    %v145 = vand.u32 %v80, 4294901760
    %v146 = vsub.f32 %v80, %v145
    %v147 = vand.u32 %v146, 4294901760
    %v148 = vsub.f32 %v146, %v147
    %v149 = vand.u32 %v148, 4294901760
    %150 = vmatpush.msra.mxu0 %v149
    %v151 = vand.u32 %v79, 4294901760
    %v152 = vsub.f32 %v79, %v151
    %v153 = vand.u32 %v152, 4294901760
    %v154 = vsub.f32 %v152, %v153
    %v155 = vand.u32 %v154, 4294901760
    %156 = vmatpush.msra.mxu0 %v155
    %v157 = vand.u32 %v78, 4294901760
    %v158 = vsub.f32 %v78, %v157
    %v159 = vand.u32 %v158, 4294901760
    %v160 = vsub.f32 %v158, %v159
    %v161 = vand.u32 %v160, 4294901760
    %162 = vmatpush.msra.mxu0 %v161
    %v163 = vand.u32 %v77, 4294901760
    %v164 = vsub.f32 %v77, %v163
    %v165 = vand.u32 %v164, 4294901760
    %v166 = vsub.f32 %v164, %v165
    %v167 = vand.u32 %v166, 4294901760
    %168 = vmatpush.msra.mxu0 %v167
    %v169 = vand.u32 %v76, 4294901760
    %v170 = vsub.f32 %v76, %v169
    %v171 = vand.u32 %v170, 4294901760
    %v172 = vsub.f32 %v170, %v171
    %v173 = vand.u32 %v172, 4294901760
    %174 = vmatpush.msra.mxu0 %v173
    %v175 = vand.u32 %v75, 4294901760
    %v176 = vsub.f32 %v75, %v175
    %v177 = vand.u32 %v176, 4294901760
    %v178 = vsub.f32 %v176, %v177
    %v179 = vand.u32 %v178, 4294901760
    %180 = vmatpush.msra.mxu0 %v179
    %v181 = vand.u32 %v74, 4294901760
    %v182 = vsub.f32 %v74, %v181
    %v183 = vand.u32 %v182, 4294901760
    %v184 = vsub.f32 %v182, %v183
    %v185 = vand.u32 %v184, 4294901760
    %186 = vmatpush.msra.mxu0 %v185
    %v187 = vand.u32 %v73, 4294901760
    %v188 = vsub.f32 %v73, %v187
    %v189 = vand.u32 %v188, 4294901760
    %v190 = vsub.f32 %v188, %v189
    %v191 = vand.u32 %v190, 4294901760
    %192 = vmatpush.msra.mxu0 %v191
    %v193 = vand.u32 %v72, 4294901760
    %v194 = vsub.f32 %v72, %v193
    %v195 = vand.u32 %v194, 4294901760
    %v196 = vsub.f32 %v194, %v195
    %v197 = vand.u32 %v196, 4294901760
    %198 = vmatpush.msra.mxu0 %v197
    %v199 = vand.u32 %v71, 4294901760
    %v200 = vsub.f32 %v71, %v199
    %v201 = vand.u32 %v200, 4294901760
    %v202 = vsub.f32 %v200, %v201
    %v203 = vand.u32 %v202, 4294901760
    %204 = vmatpush.msra.mxu0 %v203
    %v205 = vand.u32 %v70, 4294901760
    %v206 = vsub.f32 %v70, %v205
    %v207 = vand.u32 %v206, 4294901760
    %v208 = vsub.f32 %v206, %v207
    %v209 = vand.u32 %v208, 4294901760
    %210 = vmatpush.msra.mxu0 %v209
    %v211 = vand.u32 %v69, 4294901760
    %v212 = vsub.f32 %v69, %v211
    %v213 = vand.u32 %v212, 4294901760
    %v214 = vsub.f32 %v212, %v213
    %v215 = vand.u32 %v214, 4294901760
    %216 = vmatpush.msra.mxu0 %v215
    %v217 = vand.u32 %v68, 4294901760
    %v218 = vsub.f32 %v68, %v217
    %v219 = vand.u32 %v218, 4294901760
    %v220 = vsub.f32 %v218, %v219
    %v221 = vand.u32 %v220, 4294901760
    %222 = vmatpush.msra.mxu0 %v221
    %v223 = vand.u32 %v67, 4294901760
    %v224 = vsub.f32 %v67, %v223
    %v225 = vand.u32 %v224, 4294901760
    %v226 = vsub.f32 %v224, %v225
    %v227 = vand.u32 %v226, 4294901760
    %228 = vmatpush.msra.mxu0 %v227
    %v229 = vand.u32 %v66, 4294901760
    %v230 = vsub.f32 %v66, %v229
    %v231 = vand.u32 %v230, 4294901760
    %v232 = vsub.f32 %v230, %v231
    %v233 = vand.u32 %v232, 4294901760
    %234 = vmatpush.msra.mxu0 %v233
    %v235 = vand.u32 %v63, 4294901760
    %236 = vmatmul.f32.gmra.mxu0 %v235
    %v237 = vpop.f32.mrf.mxu0
    %v238 = vadd.f32 %v137, %v237
    %239 = vdwg.mxu0
    %v240 = vand.u32 %v81, 4294901760
    %v241 = vsub.f32 %v81, %v240
    %242 = vmatpush.msra.mxu0 %v241
    %v243 = vand.u32 %v80, 4294901760
    %v244 = vsub.f32 %v80, %v243
    %245 = vmatpush.msra.mxu0 %v244
    %v246 = vand.u32 %v79, 4294901760
    %v247 = vsub.f32 %v79, %v246
    %248 = vmatpush.msra.mxu0 %v247
    %v249 = vand.u32 %v78, 4294901760
    %v250 = vsub.f32 %v78, %v249
    %251 = vmatpush.msra.mxu0 %v250
    %v252 = vand.u32 %v77, 4294901760
    %v253 = vsub.f32 %v77, %v252
    %254 = vmatpush.msra.mxu0 %v253
    %v255 = vand.u32 %v76, 4294901760
    %v256 = vsub.f32 %v76, %v255
    %257 = vmatpush.msra.mxu0 %v256
    %v258 = vand.u32 %v75, 4294901760
    %v259 = vsub.f32 %v75, %v258
    %260 = vmatpush.msra.mxu0 %v259
    %v261 = vand.u32 %v74, 4294901760
    %v262 = vsub.f32 %v74, %v261
    %263 = vmatpush.msra.mxu0 %v262
    %v264 = vand.u32 %v73, 4294901760
    %v265 = vsub.f32 %v73, %v264
    %266 = vmatpush.msra.mxu0 %v265
    %v267 = vand.u32 %v72, 4294901760
    %v268 = vsub.f32 %v72, %v267
    %269 = vmatpush.msra.mxu0 %v268
    %v270 = vand.u32 %v71, 4294901760
    %v271 = vsub.f32 %v71, %v270
    %272 = vmatpush.msra.mxu0 %v271
    %v273 = vand.u32 %v70, 4294901760
    %v274 = vsub.f32 %v70, %v273
    %275 = vmatpush.msra.mxu0 %v274
    %v276 = vand.u32 %v69, 4294901760
    %v277 = vsub.f32 %v69, %v276
    %278 = vmatpush.msra.mxu0 %v277
    %v279 = vand.u32 %v68, 4294901760
    %v280 = vsub.f32 %v68, %v279
    %281 = vmatpush.msra.mxu0 %v280
    %v282 = vand.u32 %v67, 4294901760
    %v283 = vsub.f32 %v67, %v282
    %284 = vmatpush.msra.mxu0 %v283
    %v285 = vand.u32 %v66, 4294901760
    %v286 = vsub.f32 %v66, %v285
    %287 = vmatpush.msra.mxu0 %v286
    %v288 = vand.u32 %v63, 4294901760
    %v289 = vsub.f32 %v63, %v288
    %290 = vmatmul.f32.gmra.mxu0 %v289
    %v291 = vpop.f32.mrf.mxu0
    %v292 = vadd.f32 %v238, %v291
    %293 = vdwg.mxu0
    %v294 = vand.u32 %v81, 4294901760
    %295 = vmatpush.msra.mxu0 %v294
    %v296 = vand.u32 %v80, 4294901760
    %297 = vmatpush.msra.mxu0 %v296
    %v298 = vand.u32 %v79, 4294901760
    %299 = vmatpush.msra.mxu0 %v298
    %v300 = vand.u32 %v78, 4294901760
    %301 = vmatpush.msra.mxu0 %v300
    %v302 = vand.u32 %v77, 4294901760
    %303 = vmatpush.msra.mxu0 %v302
    %v304 = vand.u32 %v76, 4294901760
    %305 = vmatpush.msra.mxu0 %v304
    %v306 = vand.u32 %v75, 4294901760
    %307 = vmatpush.msra.mxu0 %v306
    %v308 = vand.u32 %v74, 4294901760
    %309 = vmatpush.msra.mxu0 %v308
    %v310 = vand.u32 %v73, 4294901760
    %311 = vmatpush.msra.mxu0 %v310
    %v312 = vand.u32 %v72, 4294901760
    %313 = vmatpush.msra.mxu0 %v312
    %v314 = vand.u32 %v71, 4294901760
    %315 = vmatpush.msra.mxu0 %v314
    %v316 = vand.u32 %v70, 4294901760
    %317 = vmatpush.msra.mxu0 %v316
    %v318 = vand.u32 %v69, 4294901760
    %319 = vmatpush.msra.mxu0 %v318
    %v320 = vand.u32 %v68, 4294901760
    %321 = vmatpush.msra.mxu0 %v320
    %v322 = vand.u32 %v67, 4294901760
    %323 = vmatpush.msra.mxu0 %v322
    %v324 = vand.u32 %v66, 4294901760
    %325 = vmatpush.msra.mxu0 %v324
    %v326 = vand.u32 %v63, 4294901760
    %v327 = vsub.f32 %v63, %v326
    %v328 = vand.u32 %v327, 4294901760
    %329 = vmatmul.f32.gmra.mxu0 %v328
    %v330 = vpop.f32.mrf.mxu0
    %v331 = vadd.f32 %v292, %v330
    %332 = vdwg.mxu0
    %v333 = vand.u32 %v81, 4294901760
    %v334 = vsub.f32 %v81, %v333
    %v335 = vand.u32 %v334, 4294901760
    %336 = vmatpush.msra.mxu0 %v335
    %v337 = vand.u32 %v80, 4294901760
    %v338 = vsub.f32 %v80, %v337
    %v339 = vand.u32 %v338, 4294901760
    %340 = vmatpush.msra.mxu0 %v339
    %v341 = vand.u32 %v79, 4294901760
    %v342 = vsub.f32 %v79, %v341
    %v343 = vand.u32 %v342, 4294901760
    %344 = vmatpush.msra.mxu0 %v343
    %v345 = vand.u32 %v78, 4294901760
    %v346 = vsub.f32 %v78, %v345
    %v347 = vand.u32 %v346, 4294901760
    %348 = vmatpush.msra.mxu0 %v347
    %v349 = vand.u32 %v77, 4294901760
    %v350 = vsub.f32 %v77, %v349
    %v351 = vand.u32 %v350, 4294901760
    %352 = vmatpush.msra.mxu0 %v351
    %v353 = vand.u32 %v76, 4294901760
    %v354 = vsub.f32 %v76, %v353
    %v355 = vand.u32 %v354, 4294901760
    %356 = vmatpush.msra.mxu0 %v355
    %v357 = vand.u32 %v75, 4294901760
    %v358 = vsub.f32 %v75, %v357
    %v359 = vand.u32 %v358, 4294901760
    %360 = vmatpush.msra.mxu0 %v359
    %v361 = vand.u32 %v74, 4294901760
    %v362 = vsub.f32 %v74, %v361
    %v363 = vand.u32 %v362, 4294901760
    %364 = vmatpush.msra.mxu0 %v363
    %v365 = vand.u32 %v73, 4294901760
    %v366 = vsub.f32 %v73, %v365
    %v367 = vand.u32 %v366, 4294901760
    %368 = vmatpush.msra.mxu0 %v367
    %v369 = vand.u32 %v72, 4294901760
    %v370 = vsub.f32 %v72, %v369
    %v371 = vand.u32 %v370, 4294901760
    %372 = vmatpush.msra.mxu0 %v371
    %v373 = vand.u32 %v71, 4294901760
    %v374 = vsub.f32 %v71, %v373
    %v375 = vand.u32 %v374, 4294901760
    %376 = vmatpush.msra.mxu0 %v375
    %v377 = vand.u32 %v70, 4294901760
    %v378 = vsub.f32 %v70, %v377
    %v379 = vand.u32 %v378, 4294901760
    %380 = vmatpush.msra.mxu0 %v379
    %v381 = vand.u32 %v69, 4294901760
    %v382 = vsub.f32 %v69, %v381
    %v383 = vand.u32 %v382, 4294901760
    %384 = vmatpush.msra.mxu0 %v383
    %v385 = vand.u32 %v68, 4294901760
    %v386 = vsub.f32 %v68, %v385
    %v387 = vand.u32 %v386, 4294901760
    %388 = vmatpush.msra.mxu0 %v387
    %v389 = vand.u32 %v67, 4294901760
    %v390 = vsub.f32 %v67, %v389
    %v391 = vand.u32 %v390, 4294901760
    %392 = vmatpush.msra.mxu0 %v391
    %v393 = vand.u32 %v66, 4294901760
    %v394 = vsub.f32 %v66, %v393
    %v395 = vand.u32 %v394, 4294901760
    %396 = vmatpush.msra.mxu0 %v395
    %v397 = vand.u32 %v63, 4294901760
    %398 = vmatmul.f32.gmra.mxu0 %v397
    %v399 = vpop.f32.mrf.mxu0
    %v400 = vadd.f32 %v331, %v399
    %401 = vdwg.mxu0
    %v402 = vand.u32 %v81, 4294901760
    %403 = vmatpush.msra.mxu0 %v402
    %v404 = vand.u32 %v80, 4294901760
    %405 = vmatpush.msra.mxu0 %v404
    %v406 = vand.u32 %v79, 4294901760
    %407 = vmatpush.msra.mxu0 %v406
    %v408 = vand.u32 %v78, 4294901760
    %409 = vmatpush.msra.mxu0 %v408
    %v410 = vand.u32 %v77, 4294901760
    %411 = vmatpush.msra.mxu0 %v410
    %v412 = vand.u32 %v76, 4294901760
    %413 = vmatpush.msra.mxu0 %v412
    %v414 = vand.u32 %v75, 4294901760
    %415 = vmatpush.msra.mxu0 %v414
    %v416 = vand.u32 %v74, 4294901760
    %417 = vmatpush.msra.mxu0 %v416
    %v418 = vand.u32 %v73, 4294901760
    %419 = vmatpush.msra.mxu0 %v418
    %v420 = vand.u32 %v72, 4294901760
    %421 = vmatpush.msra.mxu0 %v420
    %v422 = vand.u32 %v71, 4294901760
    %423 = vmatpush.msra.mxu0 %v422
    %v424 = vand.u32 %v70, 4294901760
    %425 = vmatpush.msra.mxu0 %v424
    %v426 = vand.u32 %v69, 4294901760
    %427 = vmatpush.msra.mxu0 %v426
    %v428 = vand.u32 %v68, 4294901760
    %429 = vmatpush.msra.mxu0 %v428
    %v430 = vand.u32 %v67, 4294901760
    %431 = vmatpush.msra.mxu0 %v430
    %v432 = vand.u32 %v66, 4294901760
    %433 = vmatpush.msra.mxu0 %v432
    %v434 = vand.u32 %v63, 4294901760
    %435 = vmatmul.f32.gmra.mxu0 %v434
    %v436 = vpop.f32.mrf.mxu0
    %v437 = vadd.f32 %v400, %v436
    %438 = vdwg.mxu0
    %v439 = vand.u32 %v97, 4294901760
    %440 = vmatpush.msra.mxu0 %v439
    %v441 = vand.u32 %v96, 4294901760
    %442 = vmatpush.msra.mxu0 %v441
    %v443 = vand.u32 %v95, 4294901760
    %444 = vmatpush.msra.mxu0 %v443
    %v445 = vand.u32 %v94, 4294901760
    %446 = vmatpush.msra.mxu0 %v445
    %v447 = vand.u32 %v93, 4294901760
    %448 = vmatpush.msra.mxu0 %v447
    %v449 = vand.u32 %v92, 4294901760
    %450 = vmatpush.msra.mxu0 %v449
    %v451 = vand.u32 %v91, 4294901760
    %452 = vmatpush.msra.mxu0 %v451
    %v453 = vand.u32 %v90, 4294901760
    %454 = vmatpush.msra.mxu0 %v453
    %v455 = vand.u32 %v89, 4294901760
    %456 = vmatpush.msra.mxu0 %v455
    %v457 = vand.u32 %v88, 4294901760
    %458 = vmatpush.msra.mxu0 %v457
    %v459 = vand.u32 %v87, 4294901760
    %460 = vmatpush.msra.mxu0 %v459
    %v461 = vand.u32 %v86, 4294901760
    %462 = vmatpush.msra.mxu0 %v461
    %v463 = vand.u32 %v85, 4294901760
    %464 = vmatpush.msra.mxu0 %v463
    %v465 = vand.u32 %v84, 4294901760
    %466 = vmatpush.msra.mxu0 %v465
    %v467 = vand.u32 %v83, 4294901760
    %468 = vmatpush.msra.mxu0 %v467
    %v469 = vand.u32 %v82, 4294901760
    %470 = vmatpush.msra.mxu0 %v469
    %v471 = vand.u32 %v65, 4294901760
    %v472 = vsub.f32 %v65, %v471
    %v473 = vand.u32 %v472, 4294901760
    %v474 = vsub.f32 %v472, %v473
    %v475 = vand.u32 %v474, 4294901760
    %476 = vmatmul.f32.gmra.mxu0 %v475
    %v477 = vpop.f32.mrf.mxu0
    %v478 = vadd.f32 %v437, %v477
    %479 = vdwg.mxu0
    %v480 = vand.u32 %v97, 4294901760
    %v481 = vsub.f32 %v97, %v480
    %v482 = vand.u32 %v481, 4294901760
    %v483 = vsub.f32 %v481, %v482
    %v484 = vand.u32 %v483, 4294901760
    %485 = vmatpush.msra.mxu0 %v484
    %v486 = vand.u32 %v96, 4294901760
    %v487 = vsub.f32 %v96, %v486
    %v488 = vand.u32 %v487, 4294901760
    %v489 = vsub.f32 %v487, %v488
    %v490 = vand.u32 %v489, 4294901760
    %491 = vmatpush.msra.mxu0 %v490
    %v492 = vand.u32 %v95, 4294901760
    %v493 = vsub.f32 %v95, %v492
    %v494 = vand.u32 %v493, 4294901760
    %v495 = vsub.f32 %v493, %v494
    %v496 = vand.u32 %v495, 4294901760
    %497 = vmatpush.msra.mxu0 %v496
    %v498 = vand.u32 %v94, 4294901760
    %v499 = vsub.f32 %v94, %v498
    %v500 = vand.u32 %v499, 4294901760
    %v501 = vsub.f32 %v499, %v500
    %v502 = vand.u32 %v501, 4294901760
    %503 = vmatpush.msra.mxu0 %v502
    %v504 = vand.u32 %v93, 4294901760
    %v505 = vsub.f32 %v93, %v504
    %v506 = vand.u32 %v505, 4294901760
    %v507 = vsub.f32 %v505, %v506
    %v508 = vand.u32 %v507, 4294901760
    %509 = vmatpush.msra.mxu0 %v508
    %v510 = vand.u32 %v92, 4294901760
    %v511 = vsub.f32 %v92, %v510
    %v512 = vand.u32 %v511, 4294901760
    %v513 = vsub.f32 %v511, %v512
    %v514 = vand.u32 %v513, 4294901760
    %515 = vmatpush.msra.mxu0 %v514
    %v516 = vand.u32 %v91, 4294901760
    %v517 = vsub.f32 %v91, %v516
    %v518 = vand.u32 %v517, 4294901760
    %v519 = vsub.f32 %v517, %v518
    %v520 = vand.u32 %v519, 4294901760
    %521 = vmatpush.msra.mxu0 %v520
    %v522 = vand.u32 %v90, 4294901760
    %v523 = vsub.f32 %v90, %v522
    %v524 = vand.u32 %v523, 4294901760
    %v525 = vsub.f32 %v523, %v524
    %v526 = vand.u32 %v525, 4294901760
    %527 = vmatpush.msra.mxu0 %v526
    %v528 = vand.u32 %v89, 4294901760
    %v529 = vsub.f32 %v89, %v528
    %v530 = vand.u32 %v529, 4294901760
    %v531 = vsub.f32 %v529, %v530
    %v532 = vand.u32 %v531, 4294901760
    %533 = vmatpush.msra.mxu0 %v532
    %v534 = vand.u32 %v88, 4294901760
    %v535 = vsub.f32 %v88, %v534
    %v536 = vand.u32 %v535, 4294901760
    %v537 = vsub.f32 %v535, %v536
    %v538 = vand.u32 %v537, 4294901760
    %539 = vmatpush.msra.mxu0 %v538
    %v540 = vand.u32 %v87, 4294901760
    %v541 = vsub.f32 %v87, %v540
    %v542 = vand.u32 %v541, 4294901760
    %v543 = vsub.f32 %v541, %v542
    %v544 = vand.u32 %v543, 4294901760
    %545 = vmatpush.msra.mxu0 %v544
    %v546 = vand.u32 %v86, 4294901760
    %v547 = vsub.f32 %v86, %v546
    %v548 = vand.u32 %v547, 4294901760
    %v549 = vsub.f32 %v547, %v548
    %v550 = vand.u32 %v549, 4294901760
    %551 = vmatpush.msra.mxu0 %v550
    %v552 = vand.u32 %v85, 4294901760
    %v553 = vsub.f32 %v85, %v552
    %v554 = vand.u32 %v553, 4294901760
    %v555 = vsub.f32 %v553, %v554
    %v556 = vand.u32 %v555, 4294901760
    %557 = vmatpush.msra.mxu0 %v556
    %v558 = vand.u32 %v84, 4294901760
    %v559 = vsub.f32 %v84, %v558
    %v560 = vand.u32 %v559, 4294901760
    %v561 = vsub.f32 %v559, %v560
    %v562 = vand.u32 %v561, 4294901760
    %563 = vmatpush.msra.mxu0 %v562
    %v564 = vand.u32 %v83, 4294901760
    %v565 = vsub.f32 %v83, %v564
    %v566 = vand.u32 %v565, 4294901760
    %v567 = vsub.f32 %v565, %v566
    %v568 = vand.u32 %v567, 4294901760
    %569 = vmatpush.msra.mxu0 %v568
    %v570 = vand.u32 %v82, 4294901760
    %v571 = vsub.f32 %v82, %v570
    %v572 = vand.u32 %v571, 4294901760
    %v573 = vsub.f32 %v571, %v572
    %v574 = vand.u32 %v573, 4294901760
    %575 = vmatpush.msra.mxu0 %v574
    %v576 = vand.u32 %v65, 4294901760
    %577 = vmatmul.f32.gmra.mxu0 %v576
    %v578 = vpop.f32.mrf.mxu0
    %v579 = vadd.f32 %v478, %v578
    %580 = vdwg.mxu0
    %v581 = vand.u32 %v97, 4294901760
    %v582 = vsub.f32 %v97, %v581
    %583 = vmatpush.msra.mxu0 %v582
    %v584 = vand.u32 %v96, 4294901760
    %v585 = vsub.f32 %v96, %v584
    %586 = vmatpush.msra.mxu0 %v585
    %v587 = vand.u32 %v95, 4294901760
    %v588 = vsub.f32 %v95, %v587
    %589 = vmatpush.msra.mxu0 %v588
    %v590 = vand.u32 %v94, 4294901760
    %v591 = vsub.f32 %v94, %v590
    %592 = vmatpush.msra.mxu0 %v591
    %v593 = vand.u32 %v93, 4294901760
    %v594 = vsub.f32 %v93, %v593
    %595 = vmatpush.msra.mxu0 %v594
    %v596 = vand.u32 %v92, 4294901760
    %v597 = vsub.f32 %v92, %v596
    %598 = vmatpush.msra.mxu0 %v597
    %v599 = vand.u32 %v91, 4294901760
    %v600 = vsub.f32 %v91, %v599
    %601 = vmatpush.msra.mxu0 %v600
    %v602 = vand.u32 %v90, 4294901760
    %v603 = vsub.f32 %v90, %v602
    %604 = vmatpush.msra.mxu0 %v603
    %v605 = vand.u32 %v89, 4294901760
    %v606 = vsub.f32 %v89, %v605
    %607 = vmatpush.msra.mxu0 %v606
    %v608 = vand.u32 %v88, 4294901760
    %v609 = vsub.f32 %v88, %v608
    %610 = vmatpush.msra.mxu0 %v609
    %v611 = vand.u32 %v87, 4294901760
    %v612 = vsub.f32 %v87, %v611
    %613 = vmatpush.msra.mxu0 %v612
    %v614 = vand.u32 %v86, 4294901760
    %v615 = vsub.f32 %v86, %v614
    %616 = vmatpush.msra.mxu0 %v615
    %v617 = vand.u32 %v85, 4294901760
    %v618 = vsub.f32 %v85, %v617
    %619 = vmatpush.msra.mxu0 %v618
    %v620 = vand.u32 %v84, 4294901760
    %v621 = vsub.f32 %v84, %v620
    %622 = vmatpush.msra.mxu0 %v621
    %v623 = vand.u32 %v83, 4294901760
    %v624 = vsub.f32 %v83, %v623
    %625 = vmatpush.msra.mxu0 %v624
    %v626 = vand.u32 %v82, 4294901760
    %v627 = vsub.f32 %v82, %v626
    %628 = vmatpush.msra.mxu0 %v627
    %v629 = vand.u32 %v65, 4294901760
    %v630 = vsub.f32 %v65, %v629
    %631 = vmatmul.f32.gmra.mxu0 %v630
    %v632 = vpop.f32.mrf.mxu0
    %v633 = vadd.f32 %v579, %v632
    %634 = vdwg.mxu0
    %v635 = vand.u32 %v97, 4294901760
    %636 = vmatpush.msra.mxu0 %v635
    %v637 = vand.u32 %v96, 4294901760
    %638 = vmatpush.msra.mxu0 %v637
    %v639 = vand.u32 %v95, 4294901760
    %640 = vmatpush.msra.mxu0 %v639
    %v641 = vand.u32 %v94, 4294901760
    %642 = vmatpush.msra.mxu0 %v641
    %v643 = vand.u32 %v93, 4294901760
    %644 = vmatpush.msra.mxu0 %v643
    %v645 = vand.u32 %v92, 4294901760
    %646 = vmatpush.msra.mxu0 %v645
    %v647 = vand.u32 %v91, 4294901760
    %648 = vmatpush.msra.mxu0 %v647
    %v649 = vand.u32 %v90, 4294901760
    %650 = vmatpush.msra.mxu0 %v649
    %v651 = vand.u32 %v89, 4294901760
    %652 = vmatpush.msra.mxu0 %v651
    %v653 = vand.u32 %v88, 4294901760
    %654 = vmatpush.msra.mxu0 %v653
    %v655 = vand.u32 %v87, 4294901760
    %656 = vmatpush.msra.mxu0 %v655
    %v657 = vand.u32 %v86, 4294901760
    %658 = vmatpush.msra.mxu0 %v657
    %v659 = vand.u32 %v85, 4294901760
    %660 = vmatpush.msra.mxu0 %v659
    %v661 = vand.u32 %v84, 4294901760
    %662 = vmatpush.msra.mxu0 %v661
    %v663 = vand.u32 %v83, 4294901760
    %664 = vmatpush.msra.mxu0 %v663
    %v665 = vand.u32 %v82, 4294901760
    %666 = vmatpush.msra.mxu0 %v665
    %v667 = vand.u32 %v65, 4294901760
    %v668 = vsub.f32 %v65, %v667
    %v669 = vand.u32 %v668, 4294901760
    %670 = vmatmul.f32.gmra.mxu0 %v669
    %v671 = vpop.f32.mrf.mxu0
    %v672 = vadd.f32 %v633, %v671
    %673 = vdwg.mxu0
    %v674 = vand.u32 %v97, 4294901760
    %v675 = vsub.f32 %v97, %v674
    %v676 = vand.u32 %v675, 4294901760
    %677 = vmatpush.msra.mxu0 %v676
    %v678 = vand.u32 %v96, 4294901760
    %v679 = vsub.f32 %v96, %v678
    %v680 = vand.u32 %v679, 4294901760
    %681 = vmatpush.msra.mxu0 %v680
    %v682 = vand.u32 %v95, 4294901760
    %v683 = vsub.f32 %v95, %v682
    %v684 = vand.u32 %v683, 4294901760
    %685 = vmatpush.msra.mxu0 %v684
    %v686 = vand.u32 %v94, 4294901760
    %v687 = vsub.f32 %v94, %v686
    %v688 = vand.u32 %v687, 4294901760
    %689 = vmatpush.msra.mxu0 %v688
    %v690 = vand.u32 %v93, 4294901760
    %v691 = vsub.f32 %v93, %v690
    %v692 = vand.u32 %v691, 4294901760
    %693 = vmatpush.msra.mxu0 %v692
    %v694 = vand.u32 %v92, 4294901760
    %v695 = vsub.f32 %v92, %v694
    %v696 = vand.u32 %v695, 4294901760
    %697 = vmatpush.msra.mxu0 %v696
    %v698 = vand.u32 %v91, 4294901760
    %v699 = vsub.f32 %v91, %v698
    %v700 = vand.u32 %v699, 4294901760
    %701 = vmatpush.msra.mxu0 %v700
    %v702 = vand.u32 %v90, 4294901760
    %v703 = vsub.f32 %v90, %v702
    %v704 = vand.u32 %v703, 4294901760
    %705 = vmatpush.msra.mxu0 %v704
    %v706 = vand.u32 %v89, 4294901760
    %v707 = vsub.f32 %v89, %v706
    %v708 = vand.u32 %v707, 4294901760
    %709 = vmatpush.msra.mxu0 %v708
    %v710 = vand.u32 %v88, 4294901760
    %v711 = vsub.f32 %v88, %v710
    %v712 = vand.u32 %v711, 4294901760
    %713 = vmatpush.msra.mxu0 %v712
    %v714 = vand.u32 %v87, 4294901760
    %v715 = vsub.f32 %v87, %v714
    %v716 = vand.u32 %v715, 4294901760
    %717 = vmatpush.msra.mxu0 %v716
    %v718 = vand.u32 %v86, 4294901760
    %v719 = vsub.f32 %v86, %v718
    %v720 = vand.u32 %v719, 4294901760
    %721 = vmatpush.msra.mxu0 %v720
    %v722 = vand.u32 %v85, 4294901760
    %v723 = vsub.f32 %v85, %v722
    %v724 = vand.u32 %v723, 4294901760
    %725 = vmatpush.msra.mxu0 %v724
    %v726 = vand.u32 %v84, 4294901760
    %v727 = vsub.f32 %v84, %v726
    %v728 = vand.u32 %v727, 4294901760
    %729 = vmatpush.msra.mxu0 %v728
    %v730 = vand.u32 %v83, 4294901760
    %v731 = vsub.f32 %v83, %v730
    %v732 = vand.u32 %v731, 4294901760
    %733 = vmatpush.msra.mxu0 %v732
    %v734 = vand.u32 %v82, 4294901760
    %v735 = vsub.f32 %v82, %v734
    %v736 = vand.u32 %v735, 4294901760
    %737 = vmatpush.msra.mxu0 %v736
    %v738 = vand.u32 %v65, 4294901760
    %739 = vmatmul.f32.gmra.mxu0 %v738
    %v740 = vpop.f32.mrf.mxu0
    %v741 = vadd.f32 %v672, %v740
    %742 = vdwg.mxu0
    %v743 = vand.u32 %v97, 4294901760
    %744 = vmatpush.msra.mxu0 %v743
    %v745 = vand.u32 %v96, 4294901760
    %746 = vmatpush.msra.mxu0 %v745
    %v747 = vand.u32 %v95, 4294901760
    %748 = vmatpush.msra.mxu0 %v747
    %v749 = vand.u32 %v94, 4294901760
    %750 = vmatpush.msra.mxu0 %v749
    %v751 = vand.u32 %v93, 4294901760
    %752 = vmatpush.msra.mxu0 %v751
    %v753 = vand.u32 %v92, 4294901760
    %754 = vmatpush.msra.mxu0 %v753
    %v755 = vand.u32 %v91, 4294901760
    %756 = vmatpush.msra.mxu0 %v755
    %v757 = vand.u32 %v90, 4294901760
    %758 = vmatpush.msra.mxu0 %v757
    %v759 = vand.u32 %v89, 4294901760
    %760 = vmatpush.msra.mxu0 %v759
    %v761 = vand.u32 %v88, 4294901760
    %762 = vmatpush.msra.mxu0 %v761
    %v763 = vand.u32 %v87, 4294901760
    %764 = vmatpush.msra.mxu0 %v763
    %v765 = vand.u32 %v86, 4294901760
    %766 = vmatpush.msra.mxu0 %v765
    %v767 = vand.u32 %v85, 4294901760
    %768 = vmatpush.msra.mxu0 %v767
    %v769 = vand.u32 %v84, 4294901760
    %770 = vmatpush.msra.mxu0 %v769
    %v771 = vand.u32 %v83, 4294901760
    %772 = vmatpush.msra.mxu0 %v771
    %v773 = vand.u32 %v82, 4294901760
    %774 = vmatpush.msra.mxu0 %v773
    %v775 = vand.u32 %v65, 4294901760
    %776 = vmatmul.f32.gmra.mxu0 %v775
    %v777 = vpop.f32.mrf.mxu0
    %v778 = vadd.f32 %v741, %v777
    %779 = vdwg.mxu0
    %v780 = vrcp.pop %v778
    %v781 = vmul.f32 %v778, %v780
    %v782 = vsub.f32 2.0, %v781
    %v783 = vmul.f32 %v780, %v782
    %785 = vrot.lane.b32.xlu0 %v783, 1
    %v786 = vpop.permute.xlu0 %785
    %v788 = vmul.f32 %v778, %v786
    %v789 = vsub.f32 %v788, 0.5
    %790 = vrot.lane.b32.xlu0 %v783, 2
    %v791 = vpop.permute.xlu0 %790
    %v793 = vmul.f32 %v778, %v791
    %v794 = vsub.f32 %v793, 0.5
    %v795 = vld [vmem:[%s1] sm:$0xff]
    %797 = vrot.lane.b32.xlu0 %v795, 1
    %v798 = vpop.permute.xlu0 %797
    %v800 = vsub.f32 %v789, %v798
    %v801 = vsub.f32 %v794, %v798
    %v802 = vmul.f32 %v800, %v800
    %v803 = vmul.f32 %v801, %v801
    %805 = vrot.lane.b32.xlu0 %v803, 127
    %v806 = vpop.permute.xlu0 %805
    %v808 = vadd.f32 %v802, %v806
    %v809 = vsel %vm50, %v808, 0.0
    %811 = vrot.lane.b32.xlu0 %v809, 127
    %v812 = vpop.permute.xlu0 %811
    %vm814 = vcmask 7168
    %v815 = vsel %vm814, %v812, 0.0
    %816 = vadd.xlane.f32.xlu0 %v815
    %v817 = vpop.xlane.xlu0 %816
    %v818 = vrot.slane %v817, 4
    %v819 = vadd.f32 %v817, %v818
    %v820 = vrot.slane %v819, 2
    %v821 = vadd.f32 %v819, %v820
    %v822 = vrot.slane %v821, 1
    %v823 = vadd.f32 %v821, %v822
    %s824 = vtos %v823
    %v825 = vstv %s824
    %826 = vst [vmem:[#allocation7] sm:$0xff] %v825
    // Predicated region
    $region22: #{tpu_custom_call.1} parent=1 // pred_check
      _
    $region23: #{tpu_custom_call.1} parent=1 // pred_check_branch
      %828 = sbr.rel (0) target = $region25
    $region24: #{tpu_custom_call.1} parent=1 // pred_region
      %830 = vsyncadd [#allocation4], 0
      %s832 = sshll.u32 [#allocation7], 4
      %s833 = int_to_ptr.vmem [resolvable:$true] %s832
      %s834 = sshll.u32 %s3, 4
      %s835 = int_to_ptr.hbm [resolvable:$true] %s834
      %837 = dma.vmem_to_hbm [thread:$0]  %s833, 128, %s835, [#allocation4]
    $region25: #{tpu_custom_call.1} parent=1 // pred_fallthru
      _
    // Predicated region
    $region26: #{tpu_custom_call.1} parent=1 // pred_check
      _
    $region27: #{tpu_custom_call.1} parent=1 // pred_check_branch
      %839 = sbr.rel (0) target = $region29
    $region28: #{tpu_custom_call.1} parent=1 // pred_region
      %841 = dma.done [#allocation4], 128
    $region29: #{tpu_custom_call.1} parent=1 // pred_fallthru
      _
    %842 = vsyncpa [#allocation3], 1
    %843 = vsyncpa [#allocation6], 1
    %844 = vsyncpa [#allocation4], 1

</llo_original>
